<compile_context>
chip_gen: v6e
topology: v6e:2x2x1
jax: 0.10.0
libtpu: 0.0.40
codegen_flags: <defaults>
</compile_context>

<pallas_src>
import functools

import jax
import jax.numpy as jnp
from jax.experimental import pallas as pl
from jax.experimental.pallas import tpu as pltpu


def gcn_kernel(a_ref, x_ref, w1_ref, w2_ref, o_ref,
               xw1_ref, h1_ref, colsum_ref, *, row_tile, inv_n):
    i = pl.program_id(0)

    # ---- one-time prologue: hoist X @ W1, zero the colsum accumulator ----
    @pl.when(i == 0)
    def _():
        xw1 = jnp.dot(x_ref[...], w1_ref[...],
                      preferred_element_type=jnp.float32)           # [Np, H] f32
        xw1_ref[...] = xw1.astype(xw1_ref.dtype)                     # keep bf16 resident
        colsum_ref[...] = jnp.zeros_like(colsum_ref)

    # ---- per-row-tile work (A streamed from HBM once, bf16) ----
    a = a_ref[...]                                                   # [tm, Np] bf16
    h1_tile = jnp.dot(a, xw1_ref[...],
                      preferred_element_type=jnp.float32)            # [tm, H] f32 (MXU bf16)
    start = pl.multiple_of(i * row_tile, row_tile)
    h1_ref[pl.ds(start, row_tile), :] = jnp.maximum(h1_tile, 0.0)    # ReLU on f32 accumulator

    # 1^T A, accumulated in f32 across row tiles
    colsum_ref[...] += jnp.sum(a.astype(jnp.float32), axis=0, keepdims=True)  # [1, Np]

    # ---- epilogue: out = (1/N) * (1^T A) @ h1 @ W2  (mean pool folded in) ----
    @pl.when(i == pl.num_programs(0) - 1)
    def _():
        s = jnp.dot(colsum_ref[...], h1_ref[...],
                    preferred_element_type=jnp.float32)              # [1, H]
        o_ref[...] = jnp.dot(s, w2_ref[...],
                             preferred_element_type=jnp.float32) * inv_n  # [1, C]


def _round_up(x, m):
    return (x + m - 1) // m * m


def gcn_forward(adj, x, w1, w2, *, row_tile=None):
    """adj: [N, N] dense adjacency, x: [N, F], w1: [F, H], w2: [H, C] -> [1, C]."""
    N, F = x.shape
    H = w1.shape[1]
    C = w2.shape[1]

    # ---- choose a row tile: each (tm, Np) bf16 A tile ~<= 8 MiB, so with
    # Pallas double-buffering (~16 MiB) plus scratches we stay well under the
    # 64 MiB VMEM of v7x (v5e/v6e have 128 MiB).
    n8 = max(_round_up(N, 8), 8)
    if row_tile is None:
        budget_bytes = 8 << 20
        tm = budget_bytes // (n8 * 2)            # bf16 = 2 bytes/elem
        row_tile = max(8, min(n8, (tm // 8) * 8))
    row_tile = max(8, (row_tile // 8) * 8)
    n_pad = _round_up(n8, row_tile)

    # ---- pad to tile multiples; store A as bf16 (halves HBM traffic) ----
    adj_p = jnp.zeros((n_pad, n_pad), jnp.float32).at[:N, :N].set(
        adj.astype(jnp.float32)).astype(jnp.bfloat16)
    x_p = jnp.zeros((n_pad, F), jnp.float32).at[:N, :].set(x.astype(jnp.float32))

    grid = (n_pad // row_tile,)
    kernel = functools.partial(gcn_kernel, row_tile=row_tile, inv_n=1.0 / N)

    return pl.pallas_call(
        kernel,
        out_shape=jax.ShapeDtypeStruct((1, C), jnp.float32),
        grid_spec=pltpu.PrefetchScalarGridSpec(
            num_scalar_prefetch=0,
            grid=grid,
            in_specs=[
                pl.BlockSpec((row_tile, n_pad), lambda i: (i, 0)),   # A row tile (streamed)
                pl.BlockSpec((n_pad, F), lambda i: (0, 0)),          # X (fetched once)
                pl.BlockSpec((F, H), lambda i: (0, 0)),              # W1
                pl.BlockSpec((H, C), lambda i: (0, 0)),              # W2
            ],
            out_specs=pl.BlockSpec((1, C), lambda i: (0, 0)),
            scratch_shapes=[
                pltpu.VMEM((n_pad, H), jnp.bfloat16),   # hoisted X @ W1
                pltpu.VMEM((n_pad, H), jnp.float32),    # h1 = relu(A @ XW1), resident
                pltpu.VMEM((1, n_pad), jnp.float32),    # colsum(A) accumulator
            ],
        ),
        compiler_params=pltpu.CompilerParams(
            # accumulators are carried across row tiles -> sequential axis
            dimension_semantics=("arbitrary",),
            vmem_limit_bytes=48 << 20,
        ),
    )(adj_p, x_p, w1, w2)


def build_dense_adjacency(edge_index, edge_weight, num_nodes):
    # PyG GCNConv: message flows src = edge_index[0] -> dst = edge_index[1],
    # summed at dst:  out[dst] += w * h[src]   =>   A[dst, src] = w
    src = edge_index[0]
    dst = edge_index[1]
    adj = jnp.zeros((num_nodes, num_nodes), dtype=jnp.float32)
    adj = adj.at[dst, src].add(edge_weight)
    return adj


if __name__ == "__main__":
    # Small synthetic graph consistent with the module's forward signature.
    N = 16          # number of nodes
    NFEAT = 8       # input feature dim
    HIDDEN = 32     # hidden_channels
    NCLASS = 8      # nclass
    E = 40          # number of edges

    key = jax.random.PRNGKey(0)
    k_x, k_src, k_dst, k_w, k_w1, k_w2 = jax.random.split(key, 6)

    x = jax.random.normal(k_x, (N, NFEAT), dtype=jnp.float32)
    edge_index = jnp.stack([
        jax.random.randint(k_src, (E,), 0, N),
        jax.random.randint(k_dst, (E,), 0, N),
    ], axis=0)                                           # [2, E] int32
    edge_weight = jax.random.uniform(k_w, (E,), dtype=jnp.float32)

    # Deterministic glorot-like init (GCNConv weights, bias=False).
    w1 = jax.random.normal(k_w1, (NFEAT, HIDDEN), dtype=jnp.float32) \
        * jnp.sqrt(2.0 / (NFEAT + HIDDEN))
    w2 = jax.random.normal(k_w2, (HIDDEN, NCLASS), dtype=jnp.float32) \
        * jnp.sqrt(2.0 / (HIDDEN + NCLASS))

    # Glue: densify the sparse graph (plain JAX, outside the kernel).
    adj = build_dense_adjacency(edge_index, edge_weight, N)

    # row_tile=8 forces grid=(2,) so the tiled/accumulating path is exercised
    # even at this toy size.
    out = gcn_forward(adj, x, w1, w2, row_tile=8)
    out = jax.block_until_ready(out)

    # Pure-JAX f32 reference of the ORIGINAL formulation (second aggregation +
    # mean pool, no algebraic folding, no bf16). Loose tolerance accounts for
    # the bf16 storage of A and the hoisted X@W1 inside the kernel.
    ref_h1 = jnp.maximum(adj @ (x @ w1), 0.0)
    ref = jnp.mean(adj @ (ref_h1 @ w2), axis=0, keepdims=True)

    assert out.shape == (1, NCLASS)
    assert jnp.allclose(out, ref, atol=5e-2, rtol=5e-2), (out, ref)

    print("KERNEL_OK")
</pallas_src>

<mosaic_0001>
module attributes {stable_mosaic.version = 11 : i64} {
  func.func @gcn_kernel(%arg0: i32, %arg1: memref<8x16xbf16, #tpu.memory_space<vmem>>, %arg2: memref<16x8xf32, #tpu.memory_space<vmem>>, %arg3: memref<8x32xf32, #tpu.memory_space<vmem>>, %arg4: memref<32x8xf32, #tpu.memory_space<vmem>>, %arg5: memref<1x8xf32, #tpu.memory_space<vmem>>, %arg6: memref<16x32xbf16, #tpu.memory_space<vmem>>, %arg7: memref<16x32xf32, #tpu.memory_space<vmem>>, %arg8: memref<1x16xf32, #tpu.memory_space<vmem>>) attributes {dimension_semantics = [#tpu.dimension_semantics<arbitrary>], iteration_bounds = array<i64: 2>, scalar_prefetch = 0 : i64, scratch_operands = 3 : i64, tpu.core_type = #tpu.core_type<tc>, window_params = [{transform_indices = @transform_0, window_bounds = array<i64: 8, 16>}, {pipeline_mode = #tpu.pipeline_mode<synchronous>, transform_indices = @transform_1, window_bounds = array<i64: 16, 8>}, {pipeline_mode = #tpu.pipeline_mode<synchronous>, transform_indices = @transform_2, window_bounds = array<i64: 8, 32>}, {pipeline_mode = #tpu.pipeline_mode<synchronous>, transform_indices = @transform_3, window_bounds = array<i64: 32, 8>}, {pipeline_mode = #tpu.pipeline_mode<synchronous>, transform_indices = @transform_4, window_bounds = array<i64: 1, 8>}]} {
    %c0_i32 = arith.constant 0 : i32
    %0 = arith.cmpi eq, %arg0, %c0_i32 : i32
    %1 = arith.extui %0 : i1 to i32
    %c0_i32_0 = arith.constant 0 : i32
    %2 = arith.cmpi ne, %1, %c0_i32_0 : i32
    scf.if %2 {
      %c0_12 = arith.constant 0 : index
      %c0_13 = arith.constant 0 : index
      %21 = vector.load %arg2[%c0_12, %c0_13] : memref<16x8xf32, #tpu.memory_space<vmem>>, vector<16x8xf32>
      %c0_14 = arith.constant 0 : index
      %c0_15 = arith.constant 0 : index
      %22 = vector.load %arg3[%c0_14, %c0_15] : memref<8x32xf32, #tpu.memory_space<vmem>>, vector<8x32xf32>
      %cst_16 = arith.constant dense<0.000000e+00> : vector<16x32xf32>
      %23 = tpu.matmul %21, %22, %cst_16 {dimension_numbers = #tpu.dot_dimension_numbers<[1], [0], [0], [1], [0, 0, 1, 1], [], []>} : vector<16x8xf32>, vector<8x32xf32>, vector<16x32xf32> -> vector<16x32xf32>
      %24 = arith.truncf %23 : vector<16x32xf32> to vector<16x32xbf16>
      %c0_17 = arith.constant 0 : index
      %c0_18 = arith.constant 0 : index
      %25 = vector.load %arg6[%c0_17, %c0_18] : memref<16x32xbf16, #tpu.memory_space<vmem>>, vector<16x32xbf16>
      tpu.vector_store %arg6[%c0_17, %c0_18], %24 {strides = array<i32>} : memref<16x32xbf16, #tpu.memory_space<vmem>>, vector<16x32xbf16>,
      %cst_19 = arith.constant 0.000000e+00 : f32
      %26 = vector.broadcast %cst_19 : f32 to vector<1x16xf32>
      %c0_20 = arith.constant 0 : index
      %c0_21 = arith.constant 0 : index
      %27 = vector.load %arg8[%c0_20, %c0_21] : memref<1x16xf32, #tpu.memory_space<vmem>>, vector<1x16xf32>
      tpu.vector_store %arg8[%c0_20, %c0_21], %26 {strides = array<i32>} : memref<1x16xf32, #tpu.memory_space<vmem>>, vector<1x16xf32>,
    } else {
    }
    %c0 = arith.constant 0 : index
    %c0_1 = arith.constant 0 : index
    %3 = vector.load %arg1[%c0, %c0_1] : memref<8x16xbf16, #tpu.memory_space<vmem>>, vector<8x16xbf16>
    %c0_2 = arith.constant 0 : index
    %c0_3 = arith.constant 0 : index
    %4 = vector.load %arg6[%c0_2, %c0_3] : memref<16x32xbf16, #tpu.memory_space<vmem>>, vector<16x32xbf16>
    %cst = arith.constant dense<0.000000e+00> : vector<8x32xf32>
    %5 = tpu.matmul %3, %4, %cst {dimension_numbers = #tpu.dot_dimension_numbers<[1], [0], [0], [1], [0, 0, 1, 1], [], []>} : vector<8x16xbf16>, vector<16x32xbf16>, vector<8x32xf32> -> vector<8x32xf32>
    %c8_i32 = arith.constant 8 : i32
    %6 = arith.muli %arg0, %c8_i32 : i32
    %7 = tpu.assume_multiple %6, 8 : i32
    %cst_4 = arith.constant 0.000000e+00 : f32
    %8 = vector.broadcast %cst_4 : f32 to vector<8x32xf32>
    %9 = arith.maximumf %5, %8 : vector<8x32xf32>
    %10 = arith.index_cast %7 : i32 to index
    %c0_5 = arith.constant 0 : index
    %11 = vector.load %arg7[%10, %c0_5] : memref<16x32xf32, #tpu.memory_space<vmem>>, vector<8x32xf32>
    tpu.vector_store %arg7[%10, %c0_5], %9 {strides = array<i32>} : memref<16x32xf32, #tpu.memory_space<vmem>>, vector<8x32xf32>,
    %c0_6 = arith.constant 0 : index
    %c0_7 = arith.constant 0 : index
    %12 = vector.load %arg8[%c0_6, %c0_7] : memref<1x16xf32, #tpu.memory_space<vmem>>, vector<1x16xf32>
    %13 = arith.extf %3 : vector<8x16xbf16> to vector<8x16xf32>
    %cst_8 = arith.constant dense<0.000000e+00> : vector<16xf32>
    %14 = vector.multi_reduction <add>, %13, %cst_8 [0] : vector<8x16xf32> to vector<16xf32>
    %15 = vector.shape_cast %14 : vector<16xf32> to vector<1x16xf32>
    %16 = arith.addf %12, %15 : vector<1x16xf32>
    %c0_9 = arith.constant 0 : index
    %c0_10 = arith.constant 0 : index
    %17 = vector.load %arg8[%c0_9, %c0_10] : memref<1x16xf32, #tpu.memory_space<vmem>>, vector<1x16xf32>
    tpu.vector_store %arg8[%c0_9, %c0_10], %16 {strides = array<i32>} : memref<1x16xf32, #tpu.memory_space<vmem>>, vector<1x16xf32>,
    %c1_i32 = arith.constant 1 : i32
    %18 = arith.cmpi eq, %arg0, %c1_i32 : i32
    %19 = arith.extui %18 : i1 to i32
    %c0_i32_11 = arith.constant 0 : i32
    %20 = arith.cmpi ne, %19, %c0_i32_11 : i32
    scf.if %20 {
      %c0_12 = arith.constant 0 : index
      %c0_13 = arith.constant 0 : index
      %21 = vector.load %arg8[%c0_12, %c0_13] : memref<1x16xf32, #tpu.memory_space<vmem>>, vector<1x16xf32>
      %c0_14 = arith.constant 0 : index
      %c0_15 = arith.constant 0 : index
      %22 = vector.load %arg7[%c0_14, %c0_15] : memref<16x32xf32, #tpu.memory_space<vmem>>, vector<16x32xf32>
      %cst_16 = arith.constant dense<0.000000e+00> : vector<1x32xf32>
      %23 = tpu.matmul %21, %22, %cst_16 {dimension_numbers = #tpu.dot_dimension_numbers<[1], [0], [0], [1], [0, 0, 1, 1], [], []>} : vector<1x16xf32>, vector<16x32xf32>, vector<1x32xf32> -> vector<1x32xf32>
      %c0_17 = arith.constant 0 : index
      %c0_18 = arith.constant 0 : index
      %24 = vector.load %arg4[%c0_17, %c0_18] : memref<32x8xf32, #tpu.memory_space<vmem>>, vector<32x8xf32>
      %cst_19 = arith.constant dense<0.000000e+00> : vector<1x8xf32>
      %25 = tpu.matmul %23, %24, %cst_19 {dimension_numbers = #tpu.dot_dimension_numbers<[1], [0], [0], [1], [0, 0, 1, 1], [], []>} : vector<1x32xf32>, vector<32x8xf32>, vector<1x8xf32> -> vector<1x8xf32>
      %cst_20 = arith.constant 6.250000e-02 : f32
      %26 = vector.broadcast %cst_20 : f32 to vector<1x8xf32>
      %27 = arith.mulf %25, %26 : vector<1x8xf32>
      %c0_21 = arith.constant 0 : index
      %c0_22 = arith.constant 0 : index
      %28 = vector.load %arg5[%c0_21, %c0_22] : memref<1x8xf32, #tpu.memory_space<vmem>>, vector<1x8xf32>
      tpu.vector_store %arg5[%c0_21, %c0_22], %27 {strides = array<i32>} : memref<1x8xf32, #tpu.memory_space<vmem>>, vector<1x8xf32>,
    } else {
    }
    return
  }
  func.func @transform_0(%arg0: i32) -> (i32, i32) {
    %c0_i32 = arith.constant 0 : i32
    %c0_i32_0 = arith.constant 0 : i32
    return %arg0, %c0_i32 : i32, i32
  }
  func.func @transform_1(%arg0: i32) -> (i32, i32) {
    %c0_i32 = arith.constant 0 : i32
    %c0_i32_0 = arith.constant 0 : i32
    %c0_i32_1 = arith.constant 0 : i32
    return %c0_i32, %c0_i32_0 : i32, i32
  }
  func.func @transform_2(%arg0: i32) -> (i32, i32) {
    %c0_i32 = arith.constant 0 : i32
    %c0_i32_0 = arith.constant 0 : i32
    %c0_i32_1 = arith.constant 0 : i32
    return %c0_i32, %c0_i32_0 : i32, i32
  }
  func.func @transform_3(%arg0: i32) -> (i32, i32) {
    %c0_i32 = arith.constant 0 : i32
    %c0_i32_0 = arith.constant 0 : i32
    %c0_i32_1 = arith.constant 0 : i32
    return %c0_i32, %c0_i32_0 : i32, i32
  }
  func.func @transform_4(%arg0: i32) -> (i32, i32) {
    %c0_i32 = arith.constant 0 : i32
    %c0_i32_0 = arith.constant 0 : i32
    %c0_i32_1 = arith.constant 0 : i32
    return %c0_i32, %c0_i32_0 : i32, i32
  }
}

</mosaic_0001>

<llo_original>
// kernel: tpu_custom_call.1
$region0: #{tpu_custom_call.1}
  #allocation0 [shape = 'u32[]', space=smem, size = 0x4, offset = 0x4, fixed_abs, tag = 'smem constant byte address 0x4 - core index']
  #allocation1 [shape = 'u32[144,128]{1,0:T(1,128)}', space=vmem, size = 0x12000, scoped, tag = 'internal scratch']
  #allocation2 [shape = 'bf16[16,32]{1,0:T(8,128)(2,1)}', space=vmem, size = 0x1000, scoped, tag = 'scratch operand']
  #allocation3 [shape = 'f32[16,32]{1,0:T(8,128)}', space=vmem, size = 0x2000, scoped, tag = 'scratch operand']
  #allocation4 [shape = 'f32[1,16]{1,0:T(1,128)}', space=vmem, size = 0x200, scoped, tag = 'scratch operand']
  %s0 = inlined_call_operand.vmem [shape: bf16[16,16], index: 0, kind: input, shape index: {}]
  %s1 = inlined_call_operand.vmem [shape: f32[16,8], index: 1, kind: input, shape index: {}]
  %s2 = inlined_call_operand.vmem [shape: f32[8,32], index: 2, kind: input, shape index: {}]
  %s3 = inlined_call_operand.vmem [shape: f32[32,8], index: 3, kind: input, shape index: {}]
  %s4 = inlined_call_operand.hbm [shape: f32[1,8], index: 4, kind: output, shape index: {}]
  %s5 = sld [smem:[#allocation0]]
  $region57: #{tpu_custom_call.1} parent=0
    _
  %s7 = ssub.s32 1, %s5
  %s8 = scalar_select 0, %s7, %s5
  $region1: #{tpu_custom_call.1} parent=0
    #allocation5 [shape = 'u8[512]{0}', space=vmem, size = 0x400, scoped, tag = 'output window, operand 0, single buffered']
    #allocation6 [shape = 's32[2]{0}', space=sflag, size = 0x8, scoped, tag = 'scoped memory for tpu_custom_call.1']
    %9 = vsyncpa [#allocation6], 0
    loop: start=0, step=1, limit=4
    $region2: #{tpu_custom_call.1} parent=1 // loop_pre_header
      _
    $region3: #{tpu_custom_call.1} parent=1 // loop_header
      %s11 = sphi 0, %s15
      %p12 = scmp.ge.s32.totalorder %s11, 4
      %s21 = sphi 0, %s23
      %s24 = sphi 0, %s21
      %s25 = sphi 0, %s24
      %s41 = sphi 0, %s25
      %s45 = sphi 0, %s45
      %s47 = sphi 0, %s45
      %s48 = sphi 0, %s47
      %s62 = sphi 0, %s48
      %s66 = sphi 0, %s66
      %s68 = sphi 0, %s66
      %s69 = sphi 0, %s68
      %s83 = sphi 0, %s69
      %s87 = sphi 0, %s87
      %s89 = sphi 0, %s87
      %s90 = sphi 0, %s89
      %s104 = sphi 0, %s90
      %s108 = sphi 0, %s108
      %s110 = sphi 0, %s108
      %s111 = sphi 0, %s110
      %s125 = sphi 0, %s111
    $region4: #{tpu_custom_call.1} parent=1 // loop_header_branch
      %14 = sbr.rel (%p12) target = $region8
    $region5: #{tpu_custom_call.1} parent=1 // loop_body
      %s16 = ssub.s32 %s11, 1
      %s17 = ssub.s32 %s11, 2
      %s18 = sadd.s32 %s11, 1
      %s19 = ssub.s32 %s11, %s18
      %p20 = scmp.eq.s32.totalorder %s19, 0
      %s22 = sadd.s32 %s21, 1
      %s23 = scalar_select %p20, %s21, %s22
      %p26 = pneg %p20
      %p27 = scmp.eq.s32.totalorder %s11, 1
      %p28 = por %p26, %p27
      %p29 = scmp.ne.s32.totalorder %s21, %s24
      %p30 = scmp.eq.s32.totalorder %s11, 0
      %p31 = por %p29, %p30
      %p32 = scmp.ne.s32.totalorder %s21, %s24
      %p33 = scmp.eq.s32.totalorder %s16, 1
      %p34 = por %p32, %p33
      %p35 = scmp.ne.s32.totalorder %s24, %s25
      %p36 = scmp.eq.s32.totalorder %s16, 0
      %p37 = por %p35, %p36
      %p38 = scmp.ne.s32.totalorder %s24, %s25
      %p39 = scmp.eq.s32.totalorder %s17, 1
      %p40 = por %p38, %p39
      %p42 = scmp.ne.s32.totalorder %s25, %s41
      %p43 = scmp.eq.s32.totalorder %s17, 0
      %p44 = por %p42, %p43
      %s46 = sadd.s32 %s45, 1
      %p49 = scmp.eq.s32.totalorder %s11, 1
      %p50 = scmp.ne.s32.totalorder %s45, %s47
      %p51 = scmp.eq.s32.totalorder %s11, 0
      %p52 = por %p50, %p51
      %p53 = scmp.ne.s32.totalorder %s45, %s47
      %p54 = scmp.eq.s32.totalorder %s16, 1
      %p55 = por %p53, %p54
      %p56 = scmp.ne.s32.totalorder %s47, %s48
      %p57 = scmp.eq.s32.totalorder %s16, 0
      %p58 = por %p56, %p57
      %p59 = scmp.ne.s32.totalorder %s47, %s48
      %p60 = scmp.eq.s32.totalorder %s17, 1
      %p61 = por %p59, %p60
      %p63 = scmp.ne.s32.totalorder %s48, %s62
      %p64 = scmp.eq.s32.totalorder %s17, 0
      %p65 = por %p63, %p64
      %s67 = sadd.s32 %s66, 1
      %p70 = scmp.eq.s32.totalorder %s11, 1
      %p71 = scmp.ne.s32.totalorder %s66, %s68
      %p72 = scmp.eq.s32.totalorder %s11, 0
      %p73 = por %p71, %p72
      %p74 = scmp.ne.s32.totalorder %s66, %s68
      %p75 = scmp.eq.s32.totalorder %s16, 1
      %p76 = por %p74, %p75
      %p77 = scmp.ne.s32.totalorder %s68, %s69
      %p78 = scmp.eq.s32.totalorder %s16, 0
      %p79 = por %p77, %p78
      %p80 = scmp.ne.s32.totalorder %s68, %s69
      %p81 = scmp.eq.s32.totalorder %s17, 1
      %p82 = por %p80, %p81
      %p84 = scmp.ne.s32.totalorder %s69, %s83
      %p85 = scmp.eq.s32.totalorder %s17, 0
      %p86 = por %p84, %p85
      %s88 = sadd.s32 %s87, 1
      %p91 = scmp.eq.s32.totalorder %s11, 1
      %p92 = scmp.ne.s32.totalorder %s87, %s89
      %p93 = scmp.eq.s32.totalorder %s11, 0
      %p94 = por %p92, %p93
      %p95 = scmp.ne.s32.totalorder %s87, %s89
      %p96 = scmp.eq.s32.totalorder %s16, 1
      %p97 = por %p95, %p96
      %p98 = scmp.ne.s32.totalorder %s89, %s90
      %p99 = scmp.eq.s32.totalorder %s16, 0
      %p100 = por %p98, %p99
      %p101 = scmp.ne.s32.totalorder %s89, %s90
      %p102 = scmp.eq.s32.totalorder %s17, 1
      %p103 = por %p101, %p102
      %p105 = scmp.ne.s32.totalorder %s90, %s104
      %p106 = scmp.eq.s32.totalorder %s17, 0
      %p107 = por %p105, %p106
      %s109 = sadd.s32 %s108, 1
      %p112 = scmp.eq.s32.totalorder %s11, 1
      %p113 = scmp.ne.s32.totalorder %s108, %s110
      %p114 = scmp.eq.s32.totalorder %s11, 0
      %p115 = por %p113, %p114
      %p116 = scmp.ne.s32.totalorder %s108, %s110
      %p117 = scmp.eq.s32.totalorder %s16, 1
      %p118 = por %p116, %p117
      %p119 = scmp.ne.s32.totalorder %s110, %s111
      %p120 = scmp.eq.s32.totalorder %s16, 0
      %p121 = por %p119, %p120
      %p122 = scmp.ne.s32.totalorder %s110, %s111
      %p123 = scmp.eq.s32.totalorder %s17, 1
      %p124 = por %p122, %p123
      %p126 = scmp.ne.s32.totalorder %s111, %s125
      %p127 = scmp.eq.s32.totalorder %s17, 0
      %p128 = por %p126, %p127
      %p129 = scmp.le.s32.totalorder 1, %s11
      %p130 = scmp.lt.s32.totalorder %s11, 3
      %p131 = pnand %p129, %p130
      %p132 = pneg %p131
      // Predicated region
      $region9: #{tpu_custom_call.1} parent=5 // pred_check
        _
      $region10: #{tpu_custom_call.1} parent=5 // pred_check_branch
        %134 = sbr.rel (%p131) target = $region12
      $region11: #{tpu_custom_call.1} parent=5 // pred_region
        %s135 = ssub.s32 %s11, 1
        // Predicated region
        $region13: #{tpu_custom_call.1} parent=11 // pred_check
          %p136 = pneg %p58
        $region14: #{tpu_custom_call.1} parent=11 // pred_check_branch
          %138 = sbr.rel (%p136) target = $region16
        $region15: #{tpu_custom_call.1} parent=11 // pred_region
          _
        $region16: #{tpu_custom_call.1} parent=11 // pred_fallthru
          _
        // Predicated region
        $region17: #{tpu_custom_call.1} parent=11 // pred_check
          %p139 = pneg %p79
        $region18: #{tpu_custom_call.1} parent=11 // pred_check_branch
          %141 = sbr.rel (%p139) target = $region20
        $region19: #{tpu_custom_call.1} parent=11 // pred_region
          _
        $region20: #{tpu_custom_call.1} parent=11 // pred_fallthru
          _
        // Predicated region
        $region21: #{tpu_custom_call.1} parent=11 // pred_check
          %p142 = pneg %p100
        $region22: #{tpu_custom_call.1} parent=11 // pred_check_branch
          %144 = sbr.rel (%p142) target = $region24
        $region23: #{tpu_custom_call.1} parent=11 // pred_region
          _
        $region24: #{tpu_custom_call.1} parent=11 // pred_fallthru
          _
      $region12: #{tpu_custom_call.1} parent=5 // pred_fallthru
        _
      %p145 = scmp.lt.s32.totalorder %s11, 2
      // Predicated region
      $region25: #{tpu_custom_call.1} parent=5 // pred_check
        %p146 = pneg %p145
      $region26: #{tpu_custom_call.1} parent=5 // pred_check_branch
        %148 = sbr.rel (%p146) target = $region28
      $region27: #{tpu_custom_call.1} parent=5 // pred_region
        // Predicated region
        $region29: #{tpu_custom_call.1} parent=27 // pred_check
          %p149 = pneg %p31
        $region30: #{tpu_custom_call.1} parent=27 // pred_check_branch
          %151 = sbr.rel (%p149) target = $region32
        $region31: #{tpu_custom_call.1} parent=27 // pred_region
          %p152 = scmp.lt.s32.totalorder %s11, 1
          %s153 = scalar_select %p152, %s11, 1
          %s154 = smul.addr %s153, 4
          %s155 = scalar_lea.vmem %s0, %s154
        $region32: #{tpu_custom_call.1} parent=27 // pred_fallthru
          _
      $region28: #{tpu_custom_call.1} parent=5 // pred_fallthru
        _
      %p156 = scmp.le.s32.totalorder 1, %s11
      %p157 = scmp.lt.s32.totalorder %s11, 3
      %p158 = pnand %p156, %p157
      %p159 = pneg %p158
      // Predicated region
      $region33: #{tpu_custom_call.1} parent=5 // pred_check
        _
      $region34: #{tpu_custom_call.1} parent=5 // pred_check_branch
        %161 = sbr.rel (%p158) target = $region36
      $region35: #{tpu_custom_call.1} parent=5 // pred_region
        %s162 = ssub.s32 %s11, 1
        %p163 = scmp.lt.s32.totalorder %s16, 1
        %s164 = scalar_select %p163, %s16, 1
        %s165 = smul.addr %s164, 4
        %s166 = scalar_lea.vmem %s0, %s165
        %p167 = pneg %p37
        %p168 = pneg %p34
        %p169 = pneg %p58
        %p170 = pneg %p55
        %p171 = pneg %p79
        %p172 = pneg %p76
        %p173 = pneg %p100
        %p174 = pneg %p97
        %p175 = pneg %p121
        %p176 = pneg %p118
        %p177 = scmp.lt.s32.totalorder %s16, 1
        %s178 = scalar_select %p177, %s16, 1
        %s179 = smul.addr %s178, 4
        %s180 = scalar_lea.vmem %s0, %s179
        %p182 = scmp.eq.s32.totalorder %s16, 0
        // Predicated region
        $region37: #{tpu_custom_call.1} parent=35 // pred_check
          %p183 = pneg %p182
        $region38: #{tpu_custom_call.1} parent=35 // pred_check_branch
          %185 = sbr.rel (%p183) target = $region40
        $region39: #{tpu_custom_call.1} parent=35 // pred_region
          %v186 = vld [vmem:[%s1] sm:$0xff]
          %v187 = vld [vmem:[%s1 + $0x8] sm:$0xff]
          %v188 = vld [vmem:[%s2] sm:$0xff]
          %vm189 = vcmask 64512
          %v191 = vsel %vm189, %v186, 0
          %v194 = vsel %vm189, %v187, 0
          %196 = vmatprep.subr.mxu0 0.0
          %197 = vmatpush1.msra.mxu0 0.0
          %198 = vmatprep.subr.mxu0 0.0
          %199 = vmatpush1.msra.mxu0 0.0
          %200 = vmatprep.subr.mxu0 0.0
          %201 = vmatpush1.msra.mxu0 0.0
          %202 = vmatprep.subr.mxu0 0.0
          %203 = vmatpush1.msra.mxu0 0.0
          %204 = vmatprep.subr.mxu0 0.0
          %205 = vmatpush1.msra.mxu0 0.0
          %206 = vmatprep.subr.mxu0 0.0
          %207 = vmatpush1.msra.mxu0 0.0
          %208 = vmatprep.subr.mxu0 0.0
          %209 = vmatpush1.msra.mxu0 0.0
          %210 = vmatprep.subr.mxu0 0.0
          %211 = vmatpush1.msra.mxu0 0.0
          %212 = vmatprep.subr.mxu0 0.0
          %213 = vmatpush1.msra.mxu0 0.0
          %214 = vmatprep.subr.mxu0 0.0
          %215 = vmatpush1.msra.mxu0 0.0
          %216 = vmatprep.subr.mxu0 0.0
          %217 = vmatpush1.msra.mxu0 0.0
          %218 = vmatprep.subr.mxu0 0.0
          %219 = vmatpush1.msra.mxu0 0.0
          %220 = vmatprep.subr.mxu0 0.0
          %221 = vmatpush1.msra.mxu0 0.0
          %222 = vmatprep.subr.mxu0 0.0
          %223 = vmatpush1.msra.mxu0 0.0
          %224 = vmatprep.subr.mxu0 0.0
          %225 = vmatpush1.msra.mxu0 0.0
          %226 = vmatprep.subr.mxu0 0.0
          %227 = vmatpush1.msra.mxu0 %v188
          %228 = vmatprep.subr.mxu0 0.0
          %229 = vmatpush2.msra.mxu0 0.0
          %230 = vmatprep.subr.mxu0 0.0
          %231 = vmatpush2.msra.mxu0 0.0
          %232 = vmatprep.subr.mxu0 0.0
          %233 = vmatpush2.msra.mxu0 0.0
          %234 = vmatprep.subr.mxu0 0.0
          %235 = vmatpush2.msra.mxu0 0.0
          %236 = vmatprep.subr.mxu0 0.0
          %237 = vmatpush2.msra.mxu0 0.0
          %238 = vmatprep.subr.mxu0 0.0
          %239 = vmatpush2.msra.mxu0 0.0
          %240 = vmatprep.subr.mxu0 0.0
          %241 = vmatpush2.msra.mxu0 0.0
          %242 = vmatprep.subr.mxu0 0.0
          %243 = vmatpush2.msra.mxu0 0.0
          %244 = vmatprep.subr.mxu0 0.0
          %245 = vmatpush2.msra.mxu0 0.0
          %246 = vmatprep.subr.mxu0 0.0
          %247 = vmatpush2.msra.mxu0 0.0
          %248 = vmatprep.subr.mxu0 0.0
          %249 = vmatpush2.msra.mxu0 0.0
          %250 = vmatprep.subr.mxu0 0.0
          %251 = vmatpush2.msra.mxu0 0.0
          %252 = vmatprep.subr.mxu0 0.0
          %253 = vmatpush2.msra.mxu0 0.0
          %254 = vmatprep.subr.mxu0 0.0
          %255 = vmatpush2.msra.mxu0 0.0
          %256 = vmatprep.subr.mxu0 0.0
          %257 = vmatpush2.msra.mxu0 0.0
          %258 = vmatprep.subr.mxu0 0.0
          %259 = vmatpush2.msra.mxu0 0.0
          %260 = vmatprep.mubr.f32.mxu0 0.0
          %261 = vmatmul.mubr.f32.gmra.mxu0 %v191
          %v262 = vpop.f32.mrf.mxu0
          %v263 = vadd.f32 0.0, %v262
          %v264 = vpop.f32.mrf.mxu0
          %265 = vmatprep.mubr.f32.mxu0 0.0
          %266 = vmatmul.mubr.f32.gmra.mxu0 %v194
          %v267 = vpop.f32.mrf.mxu0
          %v268 = vadd.f32 0.0, %v267
          %v269 = vpop.f32.mrf.mxu0
          %270 = vdwg.mxu0
          %v271 = vpack.c.bf16 %v268, %v263
          %v273 = vunpack.c.l.b16 %v271
          %v274 = vunpack.c.h.b16 %v271
          %v275 = vpack.c.b16 %v273, %v273
          %v276 = vpack.c.b16 %v274, %v274
          %vm279 = vcmask 257024
          %280 = vst.msk [vmem:[#allocation2] sm:$0xf] %vm279, %v275
          %281 = vst.msk [vmem:[#allocation2 + $0x4] sm:$0xf] %vm279, %v276
          %vm282 = vcmask 122880
          %283 = vst.msk [vmem:[#allocation4] sm:$0x1] %vm282, 0.0
        $region40: #{tpu_custom_call.1} parent=35 // pred_fallthru
          _
        %v284 = vld [vmem:[%s180] sm:$0xf]
        %v285 = vld [vmem:[#allocation2] sm:$0xf]
        %v286 = vld [vmem:[#allocation2 + $0x4] sm:$0xf]
        %v289 = vunpack.c.l.b16 %v285
        %v290 = vunpack.c.l.b16 %v286
        %v291 = vpack.c.b16 %v290, %v289
        %vm293 = vcmask 130048
        %v295 = vsel %vm293, %v284, 0
        %297 = vmatprep.subr.bf16.mxu0 0
        %298 = vmatpush1.bf16.msra.mxu0 0
        %299 = vmatprep.subr.bf16.mxu0 0
        %300 = vmatpush1.bf16.msra.mxu0 0
        %301 = vmatprep.subr.bf16.mxu0 0
        %302 = vmatpush1.bf16.msra.mxu0 0
        %303 = vmatprep.subr.bf16.mxu0 0
        %304 = vmatpush1.bf16.msra.mxu0 0
        %305 = vmatprep.subr.bf16.mxu0 0
        %306 = vmatpush1.bf16.msra.mxu0 0
        %307 = vmatprep.subr.bf16.mxu0 0
        %308 = vmatpush1.bf16.msra.mxu0 0
        %309 = vmatprep.subr.bf16.mxu0 0
        %310 = vmatpush1.bf16.msra.mxu0 0
        %311 = vmatprep.subr.bf16.mxu0 0
        %312 = vmatpush1.bf16.msra.mxu0 %v291
        %313 = vmatprep.subr.bf16.mxu0 0
        %314 = vmatpush2.bf16.msra.mxu0 0
        %315 = vmatprep.subr.bf16.mxu0 0
        %316 = vmatpush2.bf16.msra.mxu0 0
        %317 = vmatprep.subr.bf16.mxu0 0
        %318 = vmatpush2.bf16.msra.mxu0 0
        %319 = vmatprep.subr.bf16.mxu0 0
        %320 = vmatpush2.bf16.msra.mxu0 0
        %321 = vmatprep.subr.bf16.mxu0 0
        %322 = vmatpush2.bf16.msra.mxu0 0
        %323 = vmatprep.subr.bf16.mxu0 0
        %324 = vmatpush2.bf16.msra.mxu0 0
        %325 = vmatprep.subr.bf16.mxu0 0
        %326 = vmatpush2.bf16.msra.mxu0 0
        %327 = vmatprep.subr.bf16.mxu0 0
        %328 = vmatpush2.bf16.msra.mxu0 0
        %329 = vmatprep.mubr.bf16.mxu0 0
        %330 = vmatmul.mubr.bf16.gmra.mxu0 %v295
        %v331 = vpop.f32.mrf.mxu0
        %v332 = vadd.f32 0.0, %v331
        %v333 = vpop.f32.mrf.mxu0
        %v334 = vpop.f32.mrf.mxu0
        %v335 = vpop.f32.mrf.mxu0
        %336 = vdwg.mxu0
        %s337 = smul.u32 %s16, 8
        %v338 = vmax.f32 %v332, 0.0
        %s339 = scalar_lea.vmem [#allocation3], %s337
        %vm340 = vcmask 261120
        %341 = vst.msk [vmem:[%s339] sm:$0xff] %vm340, %v338
        %v342 = vld [vmem:[#allocation4] sm:$0x1]
        %v343 = vunpack.c.l.bf16 %v284
        %v344 = vsel %vm293, %v343, 0.0
        %v345 = vrot.slane %v344, 4
        %v346 = vadd.f32 %v344, %v345
        %v347 = vrot.slane %v346, 2
        %v348 = vadd.f32 %v346, %v347
        %v349 = vrot.slane %v348, 1
        %v350 = vadd.f32 %v348, %v349
        %v351 = vadd.f32 %v342, %v350
        %vm352 = vcmask 122880
        %353 = vst.msk [vmem:[#allocation4] sm:$0x1] %vm352, %v351
        %p354 = scmp.eq.s32.totalorder %s16, 1
        // Predicated region
        $region41: #{tpu_custom_call.1} parent=35 // pred_check
          %p355 = pneg %p354
        $region42: #{tpu_custom_call.1} parent=35 // pred_check_branch
          %357 = sbr.rel (%p355) target = $region44
        $region43: #{tpu_custom_call.1} parent=35 // pred_region
          %v358 = vld [vmem:[#allocation4] sm:$0x1]
          %v359 = vld [vmem:[#allocation3] sm:$0xff]
          %v360 = vld [vmem:[#allocation3 + $0x8] sm:$0xff]
          %v362 = vsel %vm293, %v358, 0
          %364 = vmatprep.subr.mxu0 0.0
          %365 = vmatpush1.msra.mxu0 0.0
          %366 = vmatprep.subr.mxu0 0.0
          %367 = vmatpush1.msra.mxu0 0.0
          %368 = vmatprep.subr.mxu0 0.0
          %369 = vmatpush1.msra.mxu0 0.0
          %370 = vmatprep.subr.mxu0 0.0
          %371 = vmatpush1.msra.mxu0 0.0
          %372 = vmatprep.subr.mxu0 0.0
          %373 = vmatpush1.msra.mxu0 0.0
          %374 = vmatprep.subr.mxu0 0.0
          %375 = vmatpush1.msra.mxu0 0.0
          %376 = vmatprep.subr.mxu0 0.0
          %377 = vmatpush1.msra.mxu0 0.0
          %378 = vmatprep.subr.mxu0 0.0
          %379 = vmatpush1.msra.mxu0 0.0
          %380 = vmatprep.subr.mxu0 0.0
          %381 = vmatpush1.msra.mxu0 0.0
          %382 = vmatprep.subr.mxu0 0.0
          %383 = vmatpush1.msra.mxu0 0.0
          %384 = vmatprep.subr.mxu0 0.0
          %385 = vmatpush1.msra.mxu0 0.0
          %386 = vmatprep.subr.mxu0 0.0
          %387 = vmatpush1.msra.mxu0 0.0
          %388 = vmatprep.subr.mxu0 0.0
          %389 = vmatpush1.msra.mxu0 0.0
          %390 = vmatprep.subr.mxu0 0.0
          %391 = vmatpush1.msra.mxu0 0.0
          %392 = vmatprep.subr.mxu0 0.0
          %393 = vmatpush1.msra.mxu0 %v360
          %394 = vmatprep.subr.mxu0 0.0
          %395 = vmatpush1.msra.mxu0 %v359
          %396 = vmatprep.subr.mxu0 0.0
          %397 = vmatpush2.msra.mxu0 0.0
          %398 = vmatprep.subr.mxu0 0.0
          %399 = vmatpush2.msra.mxu0 0.0
          %400 = vmatprep.subr.mxu0 0.0
          %401 = vmatpush2.msra.mxu0 0.0
          %402 = vmatprep.subr.mxu0 0.0
          %403 = vmatpush2.msra.mxu0 0.0
          %404 = vmatprep.subr.mxu0 0.0
          %405 = vmatpush2.msra.mxu0 0.0
          %406 = vmatprep.subr.mxu0 0.0
          %407 = vmatpush2.msra.mxu0 0.0
          %408 = vmatprep.subr.mxu0 0.0
          %409 = vmatpush2.msra.mxu0 0.0
          %410 = vmatprep.subr.mxu0 0.0
          %411 = vmatpush2.msra.mxu0 0.0
          %412 = vmatprep.subr.mxu0 0.0
          %413 = vmatpush2.msra.mxu0 0.0
          %414 = vmatprep.subr.mxu0 0.0
          %415 = vmatpush2.msra.mxu0 0.0
          %416 = vmatprep.subr.mxu0 0.0
          %417 = vmatpush2.msra.mxu0 0.0
          %418 = vmatprep.subr.mxu0 0.0
          %419 = vmatpush2.msra.mxu0 0.0
          %420 = vmatprep.subr.mxu0 0.0
          %421 = vmatpush2.msra.mxu0 0.0
          %422 = vmatprep.subr.mxu0 0.0
          %423 = vmatpush2.msra.mxu0 0.0
          %424 = vmatprep.subr.mxu0 0.0
          %425 = vmatpush2.msra.mxu0 0.0
          %426 = vmatprep.subr.mxu0 0.0
          %427 = vmatpush2.msra.mxu0 0.0
          %428 = vmatprep.mubr.f32.mxu0 0.0
          %429 = vmatmul.mubr.f32.gmra.mxu0 %v362
          %v430 = vpop.f32.mrf.mxu0
          %v431 = vadd.f32 0.0, %v430
          %v432 = vpop.f32.mrf.mxu0
          %433 = vdwg.mxu0
          %v434 = vld [vmem:[%s3] sm:$0xff]
          %v435 = vld [vmem:[%s3 + $0x8] sm:$0xff]
          %v436 = vld [vmem:[%s3 + $0x10] sm:$0xff]
          %v437 = vld [vmem:[%s3 + $0x18] sm:$0xff]
          %v439 = vsel %vm340, %v431, 0
          %441 = vmatprep.subr.mxu0 0.0
          %442 = vmatpush1.msra.mxu0 0.0
          %443 = vmatprep.subr.mxu0 0.0
          %444 = vmatpush1.msra.mxu0 0.0
          %445 = vmatprep.subr.mxu0 0.0
          %446 = vmatpush1.msra.mxu0 0.0
          %447 = vmatprep.subr.mxu0 0.0
          %448 = vmatpush1.msra.mxu0 0.0
          %449 = vmatprep.subr.mxu0 0.0
          %450 = vmatpush1.msra.mxu0 0.0
          %451 = vmatprep.subr.mxu0 0.0
          %452 = vmatpush1.msra.mxu0 0.0
          %453 = vmatprep.subr.mxu0 0.0
          %454 = vmatpush1.msra.mxu0 0.0
          %455 = vmatprep.subr.mxu0 0.0
          %456 = vmatpush1.msra.mxu0 0.0
          %457 = vmatprep.subr.mxu0 0.0
          %458 = vmatpush1.msra.mxu0 0.0
          %459 = vmatprep.subr.mxu0 0.0
          %460 = vmatpush1.msra.mxu0 0.0
          %461 = vmatprep.subr.mxu0 0.0
          %462 = vmatpush1.msra.mxu0 0.0
          %463 = vmatprep.subr.mxu0 0.0
          %464 = vmatpush1.msra.mxu0 0.0
          %465 = vmatprep.subr.mxu0 0.0
          %466 = vmatpush1.msra.mxu0 %v437
          %467 = vmatprep.subr.mxu0 0.0
          %468 = vmatpush1.msra.mxu0 %v436
          %469 = vmatprep.subr.mxu0 0.0
          %470 = vmatpush1.msra.mxu0 %v435
          %471 = vmatprep.subr.mxu0 0.0
          %472 = vmatpush1.msra.mxu0 %v434
          %473 = vmatprep.subr.mxu0 0.0
          %474 = vmatpush2.msra.mxu0 0.0
          %475 = vmatprep.subr.mxu0 0.0
          %476 = vmatpush2.msra.mxu0 0.0
          %477 = vmatprep.subr.mxu0 0.0
          %478 = vmatpush2.msra.mxu0 0.0
          %479 = vmatprep.subr.mxu0 0.0
          %480 = vmatpush2.msra.mxu0 0.0
          %481 = vmatprep.subr.mxu0 0.0
          %482 = vmatpush2.msra.mxu0 0.0
          %483 = vmatprep.subr.mxu0 0.0
          %484 = vmatpush2.msra.mxu0 0.0
          %485 = vmatprep.subr.mxu0 0.0
          %486 = vmatpush2.msra.mxu0 0.0
          %487 = vmatprep.subr.mxu0 0.0
          %488 = vmatpush2.msra.mxu0 0.0
          %489 = vmatprep.subr.mxu0 0.0
          %490 = vmatpush2.msra.mxu0 0.0
          %491 = vmatprep.subr.mxu0 0.0
          %492 = vmatpush2.msra.mxu0 0.0
          %493 = vmatprep.subr.mxu0 0.0
          %494 = vmatpush2.msra.mxu0 0.0
          %495 = vmatprep.subr.mxu0 0.0
          %496 = vmatpush2.msra.mxu0 0.0
          %497 = vmatprep.subr.mxu0 0.0
          %498 = vmatpush2.msra.mxu0 0.0
          %499 = vmatprep.subr.mxu0 0.0
          %500 = vmatpush2.msra.mxu0 0.0
          %501 = vmatprep.subr.mxu0 0.0
          %502 = vmatpush2.msra.mxu0 0.0
          %503 = vmatprep.subr.mxu0 0.0
          %504 = vmatpush2.msra.mxu0 0.0
          %505 = vmatprep.mubr.f32.mxu0 0.0
          %506 = vmatmul.mubr.f32.gmra.mxu0 %v439
          %v507 = vpop.f32.mrf.mxu0
          %v508 = vadd.f32 0.0, %v507
          %v509 = vpop.f32.mrf.mxu0
          %510 = vdwg.mxu0
          %v511 = vmul.f32 %v508, 0.0625
          %vm512 = vcmask 57344
          %513 = vst.msk [vmem:[#allocation5] sm:$0x1] %vm512, %v511
        $region44: #{tpu_custom_call.1} parent=35 // pred_fallthru
          _
        // Predicated region
        $region45: #{tpu_custom_call.1} parent=35 // pred_check
          %p514 = pneg %p118
        $region46: #{tpu_custom_call.1} parent=35 // pred_check_branch
          %516 = sbr.rel (%p514) target = $region48
        $region47: #{tpu_custom_call.1} parent=35 // pred_region
          %s518 = ssub.s32 16, 16
          %519 = vsyncadd [#allocation6], %s518
          %s521 = sshll.u32 [#allocation5], 4
          %s522 = int_to_ptr.vmem [resolvable:$true] %s521
          %524 = dma.vmem_to_hbm [thread:$0]  %s522, 16, %s4, [#allocation6]
        $region48: #{tpu_custom_call.1} parent=35 // pred_fallthru
          _
        // Predicated region
        $region49: #{tpu_custom_call.1} parent=35 // pred_check
          %p525 = pneg %p118
        $region50: #{tpu_custom_call.1} parent=35 // pred_check_branch
          %527 = sbr.rel (%p525) target = $region52
        $region51: #{tpu_custom_call.1} parent=35 // pred_region
          %528 = dma.done [#allocation6], 16
        $region52: #{tpu_custom_call.1} parent=35 // pred_fallthru
          _
      $region36: #{tpu_custom_call.1} parent=5 // pred_fallthru
        _
      %p529 = scmp.le.s32.totalorder 2, %s11
      // Predicated region
      $region53: #{tpu_custom_call.1} parent=5 // pred_check
        %p530 = pneg %p529
      $region54: #{tpu_custom_call.1} parent=5 // pred_check_branch
        %532 = sbr.rel (%p530) target = $region56
      $region55: #{tpu_custom_call.1} parent=5 // pred_region
        %s533 = ssub.s32 %s11, 2
      $region56: #{tpu_custom_call.1} parent=5 // pred_fallthru
        _
    $region6: #{tpu_custom_call.1} parent=1 // loop_footer
      %s15 = sadd.s32 1, %s11
    $region7: #{tpu_custom_call.1} parent=1 // loop_footer_branch
      %10 = sbr.rel target = $region3
    $region8: #{tpu_custom_call.1} parent=1 // loop_exit
      _
    %534 = vsyncpa [#allocation6], 1
    %s535 = scalar_lea.sflag [#allocation6], 1
    %536 = vsyncpa %s535, 1

</llo_original>
